<compile_context>
chip_gen: v5e
topology: v5e:2x2
jax: 0.10.0
libtpu: 0.0.40
codegen_flags: <defaults>
</compile_context>

<pallas_src>
import math
import functools

import jax
import jax.numpy as jnp
from jax.experimental import pallas as pl
from jax.experimental.pallas import tpu as pltpu


# ---------------------------------------------------------------------------
# Kernels
# ---------------------------------------------------------------------------

def _linear_kernel_direct(x_ref, w_ref, b_ref, o_ref):
    """f32 output: accumulate straight into the VMEM-resident output block."""
    k = pl.program_id(2)

    @pl.when(k == 0)
    def _():
        # Fold bias into the accumulator init (removes the epilogue VPU add).
        o_ref[...] = jnp.broadcast_to(b_ref[...].astype(o_ref.dtype), o_ref.shape)

    o_ref[...] += jnp.dot(
        x_ref[...], w_ref[...], preferred_element_type=jnp.float32
    )


def _linear_kernel_acc(x_ref, w_ref, b_ref, o_ref, acc_ref):
    """Low-precision output: f32 scratch accumulator, single cast in the epilogue."""
    k = pl.program_id(2)

    @pl.when(k == 0)
    def _():
        acc_ref[...] = jnp.broadcast_to(
            b_ref[...].astype(jnp.float32), acc_ref.shape
        )

    acc_ref[...] += jnp.dot(
        x_ref[...], w_ref[...], preferred_element_type=jnp.float32
    )

    @pl.when(k == pl.num_programs(2) - 1)
    def _():
        o_ref[...] = acc_ref[...].astype(o_ref.dtype)


# ---------------------------------------------------------------------------
# Tiling helpers
# ---------------------------------------------------------------------------

def _round_up(x, m):
    return ((x + m - 1) // m) * m


def _choose_tile(dim, target, small_align, pref_align):
    """Pick a tile for `dim`.

    dim <= target : one block (rounded up to the sublane/lane alignment only).
    dim >  target : largest tile <= target that divides `dim` exactly, preferring
                    MXU-aligned (pref_align) tiles, then finer alignment, so the
                    common case needs NO padding.  Fall back to `target` (pad) only
                    when no divisor exists.
    """
    if dim <= target:
        return _round_up(dim, small_align)
    for step in (pref_align, small_align):
        t = (target // step) * step
        while t >= step:
            if dim % t == 0:
                return t
            t -= step
    return target


def _device_kind():
    try:
        return jax.devices()[0].device_kind.lower()
    except Exception:  # pragma: no cover
        return ""


# ---------------------------------------------------------------------------
# Public forward
# ---------------------------------------------------------------------------

@functools.partial(jax.jit, static_argnames=("tm", "tn", "tk", "compute_dtype"))
def meprop_linear_forward(x, w, b, *, tm=None, tn=None, tk=None, compute_dtype=None):
    """y = x @ w + b, matching meProp `linear.forward` / `linearUnified.forward`.

    x: [M, K], w: [K, N] (NOT transposed, as in the meProp module), b: [N].
    `compute_dtype=jnp.bfloat16` casts x/w before the kernel (f32 accumulation kept).
    """
    M, K = x.shape
    K2, N = w.shape
    assert K == K2, "x/w inner dims mismatch"
    assert b.shape == (N,), "bias must be [out_features]"

    out_dtype = x.dtype
    if compute_dtype is not None and jnp.dtype(compute_dtype) != jnp.dtype(x.dtype):
        x = x.astype(compute_dtype)
        w = w.astype(compute_dtype)
    c_dtype = x.dtype
    c_item = jnp.dtype(c_dtype).itemsize
    o_item = jnp.dtype(out_dtype).itemsize
    sub_align = 16 if min(c_item, o_item) < 4 else 8  # sublane packing

    kind = _device_kind()
    mxu_align = 256 if ("v6" in kind or "v7" in kind) else 128
    vmem_budget = 64 * 1024 * 1024 if "v6" in kind else 48 * 1024 * 1024

    # Balanced large tiles: ~16-18 MiB double-buffered f32 working set, MXU-bound
    # arithmetic intensity, lane-dense (128-multiple) output stores.
    tm = tm or _choose_tile(M, 512, sub_align, mxu_align)
    tn = tn or _choose_tile(N, 1024, 128, mxu_align)
    tk = tk or _choose_tile(K, 1024, 128, mxu_align)

    # Pad only when a dim is not an exact multiple of its tile (ragged shapes).
    Mp, Np, Kp = _round_up(M, tm), _round_up(N, tn), _round_up(K, tk)

    # v7x megacore: for skinny-M layers make sure the j axis has >= 2 blocks so
    # both TensorCores get work.
    if "v7" in kind and Mp // tm == 1 and Np // tn == 1 and Np % 256 == 0 and Np >= 256:
        tn = Np // 2

    xp = x if (Mp == M and Kp == K) else jnp.pad(x, ((0, Mp - M), (0, Kp - K)))
    wp = w if (Kp == K and Np == N) else jnp.pad(w, ((0, Kp - K), (0, Np - N)))
    bp = b if Np == N else jnp.pad(b, (0, Np - N))
    b2 = bp.reshape(1, Np)  # lane-dense bias row

    grid_i, grid_j, grid_k = Mp // tm, Np // tn, Kp // tk
    grid = (grid_i, grid_j, grid_k)

    direct = jnp.dtype(out_dtype) == jnp.dtype(jnp.float32)
    kernel = _linear_kernel_direct if direct else _linear_kernel_acc
    scratch = [] if direct else [pltpu.VMEM((tm, tn), jnp.float32)]

    cost = pl.CostEstimate(
        flops=2 * Mp * Np * Kp,
        # Real DMA volume: x re-fetched per j-tile, w re-fetched per i-tile.
        bytes_accessed=(
            c_item * (Mp * Kp * grid_j + Kp * Np * grid_i)
            + jnp.dtype(b.dtype).itemsize * Np * grid_i * grid_j
            + o_item * Mp * Np
        ),
        transcendentals=0,
    )

    out = pl.pallas_call(
        kernel,
        out_shape=jax.ShapeDtypeStruct((Mp, Np), out_dtype),
        grid_spec=pltpu.PrefetchScalarGridSpec(
            num_scalar_prefetch=0,
            grid=grid,
            in_specs=[
                pl.BlockSpec((tm, tk), lambda i, j, k: (i, k)),   # x tile
                pl.BlockSpec((tk, tn), lambda i, j, k: (k, j)),   # w tile
                pl.BlockSpec((1, tn), lambda i, j, k: (0, j)),    # bias row
            ],
            out_specs=pl.BlockSpec((tm, tn), lambda i, j, k: (i, j)),
            scratch_shapes=scratch,
        ),
        compiler_params=pltpu.CompilerParams(
            dimension_semantics=("parallel", "parallel", "arbitrary"),
            vmem_limit_bytes=vmem_budget,
        ),
        cost_estimate=cost,
    )(xp, wp, b2)

    if Mp != M or Np != N:
        out = out[:M, :N]
    return out


def init_linear_params(key, in_, out_, dtype=jnp.float32):
    """Mirror Linear.reset_parameters: U(-stdv, stdv), stdv = 1/sqrt(out_)."""
    stdv = 1.0 / math.sqrt(out_)
    kw, kb = jax.random.split(key)
    w = jax.random.uniform(kw, (in_, out_), dtype=dtype, minval=-stdv, maxval=stdv)
    b = jax.random.uniform(kb, (out_,), dtype=dtype, minval=-stdv, maxval=stdv)
    return w, b


if __name__ == "__main__":
    # TODO(synk): meProp top-k sparse backward is autograd-only; not part of the
    # forward kernel (k only affects gradient selection).
    key = jax.random.PRNGKey(0)
    kx, kp, kx2, kp2, kx3, kp3 = jax.random.split(key, 6)

    # Case 1: small, nicely shaped (matches the module's [minibatch, in_features]).
    batch, in_features, out_features = 8, 32, 64
    x = jax.random.normal(kx, (batch, in_features), dtype=jnp.float32)
    w, b = init_linear_params(kp, in_features, out_features)
    y = jax.block_until_ready(meprop_linear_forward(x, w, b))
    y_ref = x @ w + b
    assert y.shape == (batch, out_features)
    assert jnp.allclose(y, y_ref, atol=1e-5, rtol=1e-5)

    # Case 2: ragged shapes (exercises the padding / slice correctness path).
    x2 = jax.random.normal(kx2, (10, 50), dtype=jnp.float32)
    w2, b2 = init_linear_params(kp2, 50, 70)
    y2 = jax.block_until_ready(meprop_linear_forward(x2, w2, b2))
    y2_ref = x2 @ w2 + b2
    assert y2.shape == (10, 70)
    assert jnp.allclose(y2, y2_ref, atol=1e-5, rtol=1e-5)

    # Case 3: bf16 compute path (f32 in/out, bf16 MXU compute, f32 accumulation).
    y3 = jax.block_until_ready(
        meprop_linear_forward(x, w, b, compute_dtype=jnp.bfloat16)
    )
    assert y3.shape == (batch, out_features)
    assert jnp.allclose(y3, y_ref, atol=5e-2, rtol=5e-2)

    # Case 4: multi-step K reduction with the direct (no-scratch) f32 accumulator.
    x4 = jax.random.normal(kx3, (64, 2048), dtype=jnp.float32)
    w4, b4 = init_linear_params(kp3, 2048, 256)
    y4 = jax.block_until_ready(meprop_linear_forward(x4, w4, b4))
    y4_ref = jnp.dot(x4, w4, precision=jax.lax.Precision.HIGHEST) + b4
    assert y4.shape == (64, 256)
    assert jnp.allclose(y4, y4_ref, atol=2e-3, rtol=2e-3)

    print("KERNEL_OK")
</pallas_src>

<mosaic_0001>
module attributes {stable_mosaic.version = 11 : i64} {
  func.func @_linear_kernel_direct(%arg0: i32, %arg1: i32, %arg2: i32, %arg3: memref<8x128xf32, #tpu.memory_space<vmem>>, %arg4: memref<128x128xf32, #tpu.memory_space<vmem>>, %arg5: memref<1x128xf32, #tpu.memory_space<vmem>>, %arg6: memref<8x128xf32, #tpu.memory_space<vmem>>) attributes {dimension_semantics = [#tpu.dimension_semantics<parallel>, #tpu.dimension_semantics<parallel>, #tpu.dimension_semantics<arbitrary>], iteration_bounds = array<i64: 1, 1, 1>, scalar_prefetch = 0 : i64, scratch_operands = 0 : i64, tpu.core_type = #tpu.core_type<tc>, window_params = [{transform_indices = @transform_0, window_bounds = array<i64: 8, 128>}, {transform_indices = @transform_1, window_bounds = array<i64: 128, 128>}, {transform_indices = @transform_2, window_bounds = array<i64: 1, 128>}, {transform_indices = @transform_3, window_bounds = array<i64: 8, 128>}]} {
    %c0_i32 = arith.constant 0 : i32
    %0 = arith.cmpi eq, %arg2, %c0_i32 : i32
    %1 = arith.extui %0 : i1 to i32
    %c0_i32_0 = arith.constant 0 : i32
    %2 = arith.cmpi ne, %1, %c0_i32_0 : i32
    scf.if %2 {
      %c0_8 = arith.constant 0 : index
      %c0_9 = arith.constant 0 : index
      %9 = vector.load %arg5[%c0_8, %c0_9] : memref<1x128xf32, #tpu.memory_space<vmem>>, vector<1x128xf32>
      %10 = vector.shape_cast %9 : vector<1x128xf32> to vector<1x128xf32>
      %11 = vector.broadcast %10 : vector<1x128xf32> to vector<8x128xf32>
      %c0_10 = arith.constant 0 : index
      %c0_11 = arith.constant 0 : index
      %12 = vector.load %arg6[%c0_10, %c0_11] : memref<8x128xf32, #tpu.memory_space<vmem>>, vector<8x128xf32>
      tpu.vector_store %arg6[%c0_10, %c0_11], %11 {strides = array<i32>} : memref<8x128xf32, #tpu.memory_space<vmem>>, vector<8x128xf32>,
    } else {
    }
    %c0 = arith.constant 0 : index
    %c0_1 = arith.constant 0 : index
    %3 = vector.load %arg6[%c0, %c0_1] : memref<8x128xf32, #tpu.memory_space<vmem>>, vector<8x128xf32>
    %c0_2 = arith.constant 0 : index
    %c0_3 = arith.constant 0 : index
    %4 = vector.load %arg3[%c0_2, %c0_3] : memref<8x128xf32, #tpu.memory_space<vmem>>, vector<8x128xf32>
    %c0_4 = arith.constant 0 : index
    %c0_5 = arith.constant 0 : index
    %5 = vector.load %arg4[%c0_4, %c0_5] : memref<128x128xf32, #tpu.memory_space<vmem>>, vector<128x128xf32>
    %cst = arith.constant dense<0.000000e+00> : vector<8x128xf32>
    %6 = tpu.matmul %4, %5, %cst {dimension_numbers = #tpu.dot_dimension_numbers<[1], [0], [0], [1], [0, 0, 1, 1], [], []>} : vector<8x128xf32>, vector<128x128xf32>, vector<8x128xf32> -> vector<8x128xf32>
    %7 = arith.addf %3, %6 : vector<8x128xf32>
    %c0_6 = arith.constant 0 : index
    %c0_7 = arith.constant 0 : index
    %8 = vector.load %arg6[%c0_6, %c0_7] : memref<8x128xf32, #tpu.memory_space<vmem>>, vector<8x128xf32>
    tpu.vector_store %arg6[%c0_6, %c0_7], %7 {strides = array<i32>} : memref<8x128xf32, #tpu.memory_space<vmem>>, vector<8x128xf32>,
    return
  }
  func.func @transform_0(%arg0: i32, %arg1: i32, %arg2: i32) -> (i32, i32) {
    %c0_i32 = arith.constant 0 : i32
    return %arg0, %arg2 : i32, i32
  }
  func.func @transform_1(%arg0: i32, %arg1: i32, %arg2: i32) -> (i32, i32) {
    %c0_i32 = arith.constant 0 : i32
    return %arg2, %arg1 : i32, i32
  }
  func.func @transform_2(%arg0: i32, %arg1: i32, %arg2: i32) -> (i32, i32) {
    %c0_i32 = arith.constant 0 : i32
    %c0_i32_0 = arith.constant 0 : i32
    return %c0_i32, %arg1 : i32, i32
  }
  func.func @transform_3(%arg0: i32, %arg1: i32, %arg2: i32) -> (i32, i32) {
    %c0_i32 = arith.constant 0 : i32
    return %arg0, %arg1 : i32, i32
  }
}

</mosaic_0001>

<llo_original>
// kernel: meprop_linear_forward.1
$region0: #{meprop_linear_forward.1}
  #allocation0 [shape = 'u32[]', space=smem, size = 0x4, offset = 0x4, fixed_abs, tag = 'smem constant byte address 0x4 - core index']
  #allocation1 [shape = 'u32[72,128]{1,0:T(1,128)}', space=vmem, size = 0x9000, scoped, tag = 'internal scratch']
  %s0 = inlined_call_operand.vmem [shape: f32[8,128], index: 0, kind: input, shape index: {}]
  %s1 = inlined_call_operand.vmem [shape: f32[128,128], index: 1, kind: input, shape index: {}]
  %s2 = inlined_call_operand.vmem [shape: f32[1,128], index: 2, kind: input, shape index: {}]
  %s3 = inlined_call_operand.hbm [shape: f32[8,128], index: 3, kind: output, shape index: {}]
  %s4 = sld [smem:[#allocation0]]
  $region26: #{meprop_linear_forward.1} parent=0
    _
  %s6 = ssub.s32 1, %s4
  %s7 = scalar_select 0, %s6, %s4
  $region1: #{meprop_linear_forward.1} parent=0
    #allocation2 [shape = 'u8[4096]{0}', space=vmem, size = 0x1000, scoped, tag = 'output window, operand 0, single buffered']
    #allocation3 [shape = 's32[1]{0}', space=sflag, size = 0x4, scoped, tag = 'scoped memory for meprop_linear_forward.1']
    %8 = vsyncpa [#allocation3], 0
    // Predicated region
    $region2: #{meprop_linear_forward.1} parent=1 // pred_check
      _
    $region3: #{meprop_linear_forward.1} parent=1 // pred_check_branch
      %10 = sbr.rel (0) target = $region5
    $region4: #{meprop_linear_forward.1} parent=1 // pred_region
      _
    $region5: #{meprop_linear_forward.1} parent=1 // pred_fallthru
      _
    // Predicated region
    $region6: #{meprop_linear_forward.1} parent=1 // pred_check
      _
    $region7: #{meprop_linear_forward.1} parent=1 // pred_check_branch
      %12 = sbr.rel (0) target = $region9
    $region8: #{meprop_linear_forward.1} parent=1 // pred_region
      _
    $region9: #{meprop_linear_forward.1} parent=1 // pred_fallthru
      _
    // Predicated region
    $region10: #{meprop_linear_forward.1} parent=1 // pred_check
      _
    $region11: #{meprop_linear_forward.1} parent=1 // pred_check_branch
      %14 = sbr.rel (0) target = $region13
    $region12: #{meprop_linear_forward.1} parent=1 // pred_region
      _
    $region13: #{meprop_linear_forward.1} parent=1 // pred_fallthru
      _
    %p15 = scmp.eq.s32.totalorder 0, 0
    // Predicated region
    $region14: #{meprop_linear_forward.1} parent=1 // pred_check
      %p16 = pneg %p15
    $region15: #{meprop_linear_forward.1} parent=1 // pred_check_branch
      %18 = sbr.rel (%p16) target = $region17
    $region16: #{meprop_linear_forward.1} parent=1 // pred_region
      %v19 = vld [vmem:[%s2] sm:$0x1]
      %v21 = vperm.slane %v19, 0
      %23 = vst [vmem:[#allocation2] sm:$0xff] %v21
    $region17: #{meprop_linear_forward.1} parent=1 // pred_fallthru
      _
    %v24 = vld [vmem:[#allocation2] sm:$0xff]
    %v25 = vld [vmem:[%s0] sm:$0xff]
    %v26 = vld [vmem:[%s1] sm:$0xff]
    %v27 = vld [vmem:[%s1 + $0x8] sm:$0xff]
    %v28 = vld [vmem:[%s1 + $0x10] sm:$0xff]
    %v29 = vld [vmem:[%s1 + $0x18] sm:$0xff]
    %v30 = vld [vmem:[%s1 + $0x20] sm:$0xff]
    %v31 = vld [vmem:[%s1 + $0x28] sm:$0xff]
    %v32 = vld [vmem:[%s1 + $0x30] sm:$0xff]
    %v33 = vld [vmem:[%s1 + $0x38] sm:$0xff]
    %v34 = vld [vmem:[%s1 + $0x40] sm:$0xff]
    %v35 = vld [vmem:[%s1 + $0x48] sm:$0xff]
    %v36 = vld [vmem:[%s1 + $0x50] sm:$0xff]
    %v37 = vld [vmem:[%s1 + $0x58] sm:$0xff]
    %v38 = vld [vmem:[%s1 + $0x60] sm:$0xff]
    %v39 = vld [vmem:[%s1 + $0x68] sm:$0xff]
    %v40 = vld [vmem:[%s1 + $0x70] sm:$0xff]
    %v41 = vld [vmem:[%s1 + $0x78] sm:$0xff]
    %42 = vmatpush.msra.mxu0 %v41
    %43 = vmatpush.msra.mxu0 %v40
    %44 = vmatpush.msra.mxu0 %v39
    %45 = vmatpush.msra.mxu0 %v38
    %46 = vmatpush.msra.mxu0 %v37
    %47 = vmatpush.msra.mxu0 %v36
    %48 = vmatpush.msra.mxu0 %v35
    %49 = vmatpush.msra.mxu0 %v34
    %50 = vmatpush.msra.mxu0 %v33
    %51 = vmatpush.msra.mxu0 %v32
    %52 = vmatpush.msra.mxu0 %v31
    %53 = vmatpush.msra.mxu0 %v30
    %54 = vmatpush.msra.mxu0 %v29
    %55 = vmatpush.msra.mxu0 %v28
    %56 = vmatpush.msra.mxu0 %v27
    %57 = vmatpush.msra.mxu0 %v26
    %58 = vmatmul.f32.gmra.mxu0 %v25
    %v59 = vpop.f32.mrf.mxu0
    %v60 = vadd.f32 0.0, %v59
    %61 = vdwg.mxu0
    %v62 = vadd.f32 %v24, %v60
    %63 = vst [vmem:[#allocation2] sm:$0xff] %v62
    // Predicated region
    $region18: #{meprop_linear_forward.1} parent=1 // pred_check
      _
    $region19: #{meprop_linear_forward.1} parent=1 // pred_check_branch
      %65 = sbr.rel (0) target = $region21
    $region20: #{meprop_linear_forward.1} parent=1 // pred_region
      %67 = vsyncadd [#allocation3], 0
      %s69 = sshll.u32 [#allocation2], 4
      %s70 = int_to_ptr.vmem [resolvable:$true] %s69
      %s71 = sshll.u32 %s3, 4
      %s72 = int_to_ptr.hbm [resolvable:$true] %s71
      %74 = dma.vmem_to_hbm [thread:$0]  %s70, 128, %s72, [#allocation3]
    $region21: #{meprop_linear_forward.1} parent=1 // pred_fallthru
      _
    // Predicated region
    $region22: #{meprop_linear_forward.1} parent=1 // pred_check
      _
    $region23: #{meprop_linear_forward.1} parent=1 // pred_check_branch
      %76 = sbr.rel (0) target = $region25
    $region24: #{meprop_linear_forward.1} parent=1 // pred_region
      %78 = dma.done [#allocation3], 128
    $region25: #{meprop_linear_forward.1} parent=1 // pred_fallthru
      _
    %79 = vsyncpa [#allocation3], 1

</llo_original>
